<compile_context>
chip_gen: v7x
topology: tpu7x:2x2x1
jax: 0.10.0
libtpu: 0.0.40
codegen_flags: <defaults>
</compile_context>

<pallas_src>
import jax
import jax.numpy as jnp
from jax import lax
from jax.experimental import pallas as pl
from jax.experimental.pallas import tpu as pltpu


def valuenet_kernel(xt_ref, act_ref, w1t_ref, b1_ref, w2_ref, b2_ref, v_ref):
    # xt_ref : (S, TB)  state tile, batch on lanes
    # act_ref: (1, TB)  int32 action ids, batch on lanes
    # w1t_ref: (H, S)   resident across grid steps
    # b1_ref : (H, 1)   resident
    # w2_ref : (H, A)   resident
    # b2_ref : (1, A)   resident
    # v_ref  : (1, TB)  lane-dense output tile
    xt = xt_ref[...]

    # linear1 + ReLU with batch kept on the lane axis: (H,S)@(S,TB) -> (H,TB)
    ht = jnp.dot(w1t_ref[...], xt, preferred_element_type=jnp.float32) + b1_ref[...]
    ht = jnp.maximum(ht, 0.0)

    # One-hot of the gathered action: (A, TB), batch on lanes.
    a = act_ref[...]                                    # (1, TB) int32
    n_action = w2_ref.shape[1]
    tb = a.shape[1]
    row = lax.broadcasted_iota(jnp.int32, (n_action, tb), 0)
    onehot_t = (row == a).astype(jnp.float32)           # (A, TB)

    # Selected-dot gather: w2_sel[:, b] = w2[:, action[b]] -- q is never formed.
    w2_sel = jnp.dot(w2_ref[...], onehot_t, preferred_element_type=jnp.float32)  # (H, TB)
    b2_sel = jnp.dot(b2_ref[...], onehot_t, preferred_element_type=jnp.float32)  # (1, TB)

    # v[b] = sum_k h[k,b] * w2[k, a_b] + b2[a_b]   -> lane-dense (1, TB) store
    v_ref[...] = jnp.sum(ht * w2_sel, axis=0, keepdims=True) + b2_sel


def value_net_forward(state, action, w1, b1, w2, b2, *, block_b=None):
    """state: (B, S) f32, action: (B,) int, w1: (S,H), b1: (1,H), w2: (H,A), b2: (1,A) -> (B,) f32."""
    B, S = state.shape
    H = w1.shape[1]
    A = w2.shape[1]
    if block_b is None:
        block_b = 512 if B >= 512 else 128
    n_blocks = pl.cdiv(B, block_b)
    b_pad = n_blocks * block_b
    pad = b_pad - B

    # Lane-dense layouts: batch on the last (lane) axis. Pad batch to a tile multiple.
    state_t = jnp.pad(state.astype(jnp.float32), ((0, pad), (0, 0))).T            # (S, B_pad)
    action_row = jnp.pad(action.astype(jnp.int32), (0, pad)).reshape(1, b_pad)    # (1, B_pad)
    w1t = w1.T                                                                    # (H, S)
    b1c = b1.reshape(H, 1)                                                        # (H, 1)

    v2d = pl.pallas_call(
        valuenet_kernel,
        out_shape=jax.ShapeDtypeStruct((1, b_pad), jnp.float32),
        grid=(n_blocks,),
        in_specs=[
            pl.BlockSpec((S, block_b), lambda i: (0, i)),   # state tile (batch on lanes)
            pl.BlockSpec((1, block_b), lambda i: (0, i)),   # action tile (batch on lanes)
            pl.BlockSpec((H, S), lambda i: (0, 0)),         # w1t   (resident)
            pl.BlockSpec((H, 1), lambda i: (0, 0)),         # b1    (resident)
            pl.BlockSpec((H, A), lambda i: (0, 0)),         # w2    (resident)
            pl.BlockSpec((1, A), lambda i: (0, 0)),         # b2    (resident)
        ],
        out_specs=pl.BlockSpec((1, block_b), lambda i: (0, i)),
        compiler_params=pltpu.CompilerParams(
            dimension_semantics=("parallel",),              # v7x: shard batch over both TCs
        ),
    )(state_t, action_row, w1t, b1c, w2, b2)
    return v2d[0, :B]


if __name__ == "__main__":
    # Small shapes consistent with the module: batch=8, state_dim=16,
    # hidden_dim=32, n_action=4.
    B, STATE_DIM, HIDDEN_DIM, N_ACTION = 8, 16, 32, 4

    key = jax.random.PRNGKey(0)
    k_s, k_a, k_w1, k_b1, k_w2, k_b2 = jax.random.split(key, 6)

    state = jax.random.normal(k_s, (B, STATE_DIM), dtype=jnp.float32)
    action = jax.random.randint(k_a, (B,), 0, N_ACTION, dtype=jnp.int32)

    # Deterministic parameter init (uniform +-1/sqrt(fan_in), like torch Linear).
    bound1 = 1.0 / (STATE_DIM ** 0.5)
    bound2 = 1.0 / (HIDDEN_DIM ** 0.5)
    w1 = jax.random.uniform(k_w1, (STATE_DIM, HIDDEN_DIM), jnp.float32, -bound1, bound1)
    b1 = jax.random.uniform(k_b1, (1, HIDDEN_DIM), jnp.float32, -bound1, bound1)
    w2 = jax.random.uniform(k_w2, (HIDDEN_DIM, N_ACTION), jnp.float32, -bound2, bound2)
    b2 = jax.random.uniform(k_b2, (1, N_ACTION), jnp.float32, -bound2, bound2)

    fwd = jax.jit(value_net_forward)
    v = jax.block_until_ready(fwd(state, action, w1, b1, w2, b2))

    # Reference check in plain JAX.
    q_ref = jnp.maximum(state @ w1 + b1, 0.0) @ w2 + b2
    v_ref = jnp.take_along_axis(q_ref, action.reshape(-1, 1), axis=1).reshape(-1)
    assert v.shape == (B,)
    assert jnp.allclose(v, v_ref, atol=1e-5, rtol=1e-5)

    print("KERNEL_OK")
</pallas_src>

<mosaic_0001>
module attributes {stable_mosaic.version = 11 : i64} {
  func.func @valuenet_kernel(%arg0: i32, %arg1: memref<16x128xf32, #tpu.memory_space<vmem>>, %arg2: memref<1x128xi32, #tpu.memory_space<vmem>>, %arg3: memref<32x16xf32, #tpu.memory_space<vmem>>, %arg4: memref<32x1xf32, #tpu.memory_space<vmem>>, %arg5: memref<32x4xf32, #tpu.memory_space<vmem>>, %arg6: memref<1x4xf32, #tpu.memory_space<vmem>>, %arg7: memref<1x128xf32, #tpu.memory_space<vmem>>) attributes {dimension_semantics = [#tpu.dimension_semantics<parallel>], iteration_bounds = array<i64: 1>, scalar_prefetch = 0 : i64, scratch_operands = 0 : i64, tpu.core_type = #tpu.core_type<tc>, window_params = [{transform_indices = @transform_0, window_bounds = array<i64: 16, 128>}, {transform_indices = @transform_1, window_bounds = array<i64: 1, 128>}, {pipeline_mode = #tpu.pipeline_mode<synchronous>, transform_indices = @transform_2, window_bounds = array<i64: 32, 16>}, {pipeline_mode = #tpu.pipeline_mode<synchronous>, transform_indices = @transform_3, window_bounds = array<i64: 32, 1>}, {pipeline_mode = #tpu.pipeline_mode<synchronous>, transform_indices = @transform_4, window_bounds = array<i64: 32, 4>}, {pipeline_mode = #tpu.pipeline_mode<synchronous>, transform_indices = @transform_5, window_bounds = array<i64: 1, 4>}, {transform_indices = @transform_6, window_bounds = array<i64: 1, 128>}]} {
    %c0 = arith.constant 0 : index
    %c0_0 = arith.constant 0 : index
    %0 = vector.load %arg1[%c0, %c0_0] : memref<16x128xf32, #tpu.memory_space<vmem>>, vector<16x128xf32>
    %c0_1 = arith.constant 0 : index
    %c0_2 = arith.constant 0 : index
    %1 = vector.load %arg3[%c0_1, %c0_2] : memref<32x16xf32, #tpu.memory_space<vmem>>, vector<32x16xf32>
    %cst = arith.constant dense<0.000000e+00> : vector<32x128xf32>
    %2 = tpu.matmul %1, %0, %cst {dimension_numbers = #tpu.dot_dimension_numbers<[1], [0], [0], [1], [0, 0, 1, 1], [], []>} : vector<32x16xf32>, vector<16x128xf32>, vector<32x128xf32> -> vector<32x128xf32>
    %c0_3 = arith.constant 0 : index
    %c0_4 = arith.constant 0 : index
    %3 = vector.load %arg4[%c0_3, %c0_4] : memref<32x1xf32, #tpu.memory_space<vmem>>, vector<32x1xf32>
    %4 = vector.broadcast %3 : vector<32x1xf32> to vector<32x128xf32>
    %5 = arith.addf %2, %4 : vector<32x128xf32>
    %cst_5 = arith.constant 0.000000e+00 : f32
    %6 = vector.broadcast %cst_5 : f32 to vector<32x128xf32>
    %7 = arith.maximumf %5, %6 : vector<32x128xf32>
    %c0_6 = arith.constant 0 : index
    %c0_7 = arith.constant 0 : index
    %8 = vector.load %arg2[%c0_6, %c0_7] : memref<1x128xi32, #tpu.memory_space<vmem>>, vector<1x128xi32>
    %9 = tpu.iota {dimensions = array<i32: 0>} : vector<4x128xi32>
    %10 = vector.broadcast %8 : vector<1x128xi32> to vector<4x128xi32>
    %11 = arith.cmpi eq, %9, %10 : vector<4x128xi32>
    %12 = arith.extui %11 : vector<4x128xi1> to vector<4x128xi32>
    %13 = arith.sitofp %12 : vector<4x128xi32> to vector<4x128xf32>
    %c0_8 = arith.constant 0 : index
    %c0_9 = arith.constant 0 : index
    %14 = vector.load %arg5[%c0_8, %c0_9] : memref<32x4xf32, #tpu.memory_space<vmem>>, vector<32x4xf32>
    %cst_10 = arith.constant dense<0.000000e+00> : vector<32x128xf32>
    %15 = tpu.matmul %14, %13, %cst_10 {dimension_numbers = #tpu.dot_dimension_numbers<[1], [0], [0], [1], [0, 0, 1, 1], [], []>} : vector<32x4xf32>, vector<4x128xf32>, vector<32x128xf32> -> vector<32x128xf32>
    %c0_11 = arith.constant 0 : index
    %c0_12 = arith.constant 0 : index
    %16 = vector.load %arg6[%c0_11, %c0_12] : memref<1x4xf32, #tpu.memory_space<vmem>>, vector<1x4xf32>
    %cst_13 = arith.constant dense<0.000000e+00> : vector<1x128xf32>
    %17 = tpu.matmul %16, %13, %cst_13 {dimension_numbers = #tpu.dot_dimension_numbers<[1], [0], [0], [1], [0, 0, 1, 1], [], []>} : vector<1x4xf32>, vector<4x128xf32>, vector<1x128xf32> -> vector<1x128xf32>
    %18 = arith.mulf %7, %15 : vector<32x128xf32>
    %cst_14 = arith.constant dense<0.000000e+00> : vector<128xf32>
    %19 = vector.multi_reduction <add>, %18, %cst_14 [0] : vector<32x128xf32> to vector<128xf32>
    %20 = vector.shape_cast %19 : vector<128xf32> to vector<1x128xf32>
    %21 = arith.addf %20, %17 : vector<1x128xf32>
    %c0_15 = arith.constant 0 : index
    %c0_16 = arith.constant 0 : index
    %22 = vector.load %arg7[%c0_15, %c0_16] : memref<1x128xf32, #tpu.memory_space<vmem>>, vector<1x128xf32>
    tpu.vector_store %arg7[%c0_15, %c0_16], %21 {strides = array<i32>} : memref<1x128xf32, #tpu.memory_space<vmem>>, vector<1x128xf32>,
    return
  }
  func.func @transform_0(%arg0: i32) -> (i32, i32) {
    %c0_i32 = arith.constant 0 : i32
    %c0_i32_0 = arith.constant 0 : i32
    return %c0_i32, %arg0 : i32, i32
  }
  func.func @transform_1(%arg0: i32) -> (i32, i32) {
    %c0_i32 = arith.constant 0 : i32
    %c0_i32_0 = arith.constant 0 : i32
    return %c0_i32, %arg0 : i32, i32
  }
  func.func @transform_2(%arg0: i32) -> (i32, i32) {
    %c0_i32 = arith.constant 0 : i32
    %c0_i32_0 = arith.constant 0 : i32
    %c0_i32_1 = arith.constant 0 : i32
    return %c0_i32, %c0_i32_0 : i32, i32
  }
  func.func @transform_3(%arg0: i32) -> (i32, i32) {
    %c0_i32 = arith.constant 0 : i32
    %c0_i32_0 = arith.constant 0 : i32
    %c0_i32_1 = arith.constant 0 : i32
    return %c0_i32, %c0_i32_0 : i32, i32
  }
  func.func @transform_4(%arg0: i32) -> (i32, i32) {
    %c0_i32 = arith.constant 0 : i32
    %c0_i32_0 = arith.constant 0 : i32
    %c0_i32_1 = arith.constant 0 : i32
    return %c0_i32, %c0_i32_0 : i32, i32
  }
  func.func @transform_5(%arg0: i32) -> (i32, i32) {
    %c0_i32 = arith.constant 0 : i32
    %c0_i32_0 = arith.constant 0 : i32
    %c0_i32_1 = arith.constant 0 : i32
    return %c0_i32, %c0_i32_0 : i32, i32
  }
  func.func @transform_6(%arg0: i32) -> (i32, i32) {
    %c0_i32 = arith.constant 0 : i32
    %c0_i32_0 = arith.constant 0 : i32
    return %c0_i32, %arg0 : i32, i32
  }
}

</mosaic_0001>

<llo_original>
// kernel: value_net_forward.1
$region0: #{value_net_forward.1}
  #allocation0 [shape = 'u32[]', space=smem, size = 0x4, offset = 0x4, fixed_abs, tag = 'smem constant byte address 0x4 - core index']
  #allocation1 [shape = 'u32[144,128]{1,0:T(1,128)}', space=vmem, size = 0x12000, scoped, tag = 'internal scratch']
  %s0 = inlined_call_operand.vmem [shape: f32[16,128], index: 0, kind: input, shape index: {}]
  %s1 = inlined_call_operand.vmem [shape: s32[1,128], index: 1, kind: input, shape index: {}]
  %s2 = inlined_call_operand.vmem [shape: f32[32,16], index: 2, kind: input, shape index: {}]
  %s3 = inlined_call_operand.vmem [shape: f32[32,1], index: 3, kind: input, shape index: {}]
  %s4 = inlined_call_operand.vmem [shape: f32[32,4], index: 4, kind: input, shape index: {}]
  %s5 = inlined_call_operand.vmem [shape: f32[1,4], index: 5, kind: input, shape index: {}]
  %s6 = inlined_call_operand.vmem [shape: f32[1,128], index: 6, kind: output, shape index: {}]
  %s7 = sld [smem:[#allocation0]]
  $region34: #{value_net_forward.1} parent=0
    _
  %s9 = ssub.s32 1, %s7
  %s10 = scalar_select 0, %s9, %s7
  // Predicated region
  $region2: #{value_net_forward.1} parent=0 // pred_check
    _
  $region3: #{value_net_forward.1} parent=0 // pred_check_branch
    %12 = sbr.rel (0) target = $region5
  $region4: #{value_net_forward.1} parent=0 // pred_region
    _
  $region5: #{value_net_forward.1} parent=0 // pred_fallthru
    _
  // Predicated region
  $region6: #{value_net_forward.1} parent=0 // pred_check
    _
  $region7: #{value_net_forward.1} parent=0 // pred_check_branch
    %14 = sbr.rel (0) target = $region9
  $region8: #{value_net_forward.1} parent=0 // pred_region
    _
  $region9: #{value_net_forward.1} parent=0 // pred_fallthru
    _
  // Predicated region
  $region10: #{value_net_forward.1} parent=0 // pred_check
    _
  $region11: #{value_net_forward.1} parent=0 // pred_check_branch
    %16 = sbr.rel (0) target = $region13
  $region12: #{value_net_forward.1} parent=0 // pred_region
    _
  $region13: #{value_net_forward.1} parent=0 // pred_fallthru
    _
  // Predicated region
  $region14: #{value_net_forward.1} parent=0 // pred_check
    _
  $region15: #{value_net_forward.1} parent=0 // pred_check_branch
    %18 = sbr.rel (0) target = $region17
  $region16: #{value_net_forward.1} parent=0 // pred_region
    _
  $region17: #{value_net_forward.1} parent=0 // pred_fallthru
    _
  // Predicated region
  $region18: #{value_net_forward.1} parent=0 // pred_check
    _
  $region19: #{value_net_forward.1} parent=0 // pred_check_branch
    %20 = sbr.rel (0) target = $region21
  $region20: #{value_net_forward.1} parent=0 // pred_region
    _
  $region21: #{value_net_forward.1} parent=0 // pred_fallthru
    _
  // Predicated region
  $region22: #{value_net_forward.1} parent=0 // pred_check
    _
  $region23: #{value_net_forward.1} parent=0 // pred_check_branch
    %22 = sbr.rel (0) target = $region25
  $region24: #{value_net_forward.1} parent=0 // pred_region
    _
  $region25: #{value_net_forward.1} parent=0 // pred_fallthru
    _
  %v23 = vld [vmem:[%s0] sm:$0xff]
  %v24 = vld [vmem:[%s0 + $0x8] sm:$0xff]
  %v25 = vld [vmem:[%s2] sm:$0xff]
  %v26 = vld [vmem:[%s2 + $0x8] sm:$0xff]
  %v27 = vld [vmem:[%s2 + $0x10] sm:$0xff]
  %v28 = vld [vmem:[%s2 + $0x18] sm:$0xff]
  %v29 = vld [vmem:[%s3] sm:$0xff]
  %v30 = vld [vmem:[%s3 + $0x8] sm:$0xff]
  %v31 = vld [vmem:[%s3 + $0x10] sm:$0xff]
  %v32 = vld [vmem:[%s3 + $0x18] sm:$0xff]
  %34 = vset.pattern.permute.xlu0 0
  %35 = vperm.xlu0 %34, %v29
  %v36 = vpop.permute.xlu0 %35
  %39 = vset.pattern.permute.xlu0 0
  %40 = vperm.xlu0 %39, %v30
  %v41 = vpop.permute.xlu0 %40
  %44 = vset.pattern.permute.xlu0 0
  %45 = vperm.xlu0 %44, %v31
  %v46 = vpop.permute.xlu0 %45
  %49 = vset.pattern.permute.xlu0 0
  %50 = vperm.xlu0 %49, %v32
  %v51 = vpop.permute.xlu0 %50
  %vm53 = vcmask 130048
  %v55 = vsel %vm53, %v25, 0
  %v58 = vsel %vm53, %v26, 0
  %v61 = vsel %vm53, %v27, 0
  %v64 = vsel %vm53, %v28, 0
  %66 = vmatprep.subr.mxu0 0.0
  %67 = vmatpush1.msra.mxu0 %v23
  %68 = vmatprep.subr.mxu0 0.0
  %69 = vmatpush1.msra.mxu0 %v24
  %70 = vmatprep.subr.mxu0 0.0
  %71 = vmatpush1.msra.mxu0 0.0
  %72 = vmatprep.subr.mxu0 0.0
  %73 = vmatpush1.msra.mxu0 0.0
  %74 = vmatprep.subr.mxu0 0.0
  %75 = vmatpush1.msra.mxu0 0.0
  %76 = vmatprep.subr.mxu0 0.0
  %77 = vmatpush1.msra.mxu0 0.0
  %78 = vmatprep.subr.mxu0 0.0
  %79 = vmatpush1.msra.mxu0 0.0
  %80 = vmatprep.subr.mxu0 0.0
  %81 = vmatpush1.msra.mxu0 0.0
  %82 = vmatprep.subr.mxu0 0.0
  %83 = vmatpush1.msra.mxu0 0.0
  %84 = vmatprep.subr.mxu0 0.0
  %85 = vmatpush1.msra.mxu0 0.0
  %86 = vmatprep.subr.mxu0 0.0
  %87 = vmatpush1.msra.mxu0 0.0
  %88 = vmatprep.subr.mxu0 0.0
  %89 = vmatpush1.msra.mxu0 0.0
  %90 = vmatprep.subr.mxu0 0.0
  %91 = vmatpush1.msra.mxu0 0.0
  %92 = vmatprep.subr.mxu0 0.0
  %93 = vmatpush1.msra.mxu0 0.0
  %94 = vmatprep.subr.mxu0 0.0
  %95 = vmatpush1.msra.mxu0 0.0
  %96 = vmatprep.subr.mxu0 0.0
  %97 = vmatpush1.msra.mxu0 0.0
  %98 = vmatprep.subr.mxu0 0.0
  %99 = vmatpush1.msra.mxu0 0.0
  %100 = vmatprep.subr.mxu0 0.0
  %101 = vmatpush1.msra.mxu0 0.0
  %102 = vmatprep.subr.mxu0 0.0
  %103 = vmatpush1.msra.mxu0 0.0
  %104 = vmatprep.subr.mxu0 0.0
  %105 = vmatpush1.msra.mxu0 0.0
  %106 = vmatprep.subr.mxu0 0.0
  %107 = vmatpush1.msra.mxu0 0.0
  %108 = vmatprep.subr.mxu0 0.0
  %109 = vmatpush1.msra.mxu0 0.0
  %110 = vmatprep.subr.mxu0 0.0
  %111 = vmatpush1.msra.mxu0 0.0
  %112 = vmatprep.subr.mxu0 0.0
  %113 = vmatpush1.msra.mxu0 0.0
  %114 = vmatprep.subr.mxu0 0.0
  %115 = vmatpush1.msra.mxu0 0.0
  %116 = vmatprep.subr.mxu0 0.0
  %117 = vmatpush1.msra.mxu0 0.0
  %118 = vmatprep.subr.mxu0 0.0
  %119 = vmatpush1.msra.mxu0 0.0
  %120 = vmatprep.subr.mxu0 0.0
  %121 = vmatpush1.msra.mxu0 0.0
  %122 = vmatprep.subr.mxu0 0.0
  %123 = vmatpush1.msra.mxu0 0.0
  %124 = vmatprep.subr.mxu0 0.0
  %125 = vmatpush1.msra.mxu0 0.0
  %126 = vmatprep.subr.mxu0 0.0
  %127 = vmatpush1.msra.mxu0 0.0
  %128 = vmatprep.subr.mxu0 0.0
  %129 = vmatpush1.msra.mxu0 0.0
  %130 = vmatprep.mubr.f32.mxu0 0.0
  %131 = vmatmul.mubr.f32.gmra.mrb[0].mxu0 %v55
  %v132 = vpop.f32.mrb[0].mxu0
  %v133 = vadd.f32 %v36, %v132
  %v134 = vpop.f32.mrb[0].mxu0
  %135 = vmatprep.mubr.f32.mxu0 0.0
  %136 = vmatmul.mubr.f32.gmra.mrb[0].mxu0 %v58
  %v137 = vpop.f32.mrb[0].mxu0
  %v138 = vadd.f32 %v41, %v137
  %v139 = vpop.f32.mrb[0].mxu0
  %140 = vmatprep.mubr.f32.mxu0 0.0
  %141 = vmatmul.mubr.f32.gmra.mrb[0].mxu0 %v61
  %v142 = vpop.f32.mrb[0].mxu0
  %v143 = vadd.f32 %v46, %v142
  %v144 = vpop.f32.mrb[0].mxu0
  %145 = vmatprep.mubr.f32.mxu0 0.0
  %146 = vmatmul.mubr.f32.gmra.mrb[0].mxu0 %v64
  %v147 = vpop.f32.mrb[0].mxu0
  %v148 = vadd.f32 %v51, %v147
  %v149 = vpop.f32.mrb[0].mxu0
  %150 = vdwg.mxu0
  %v151 = vmax.f32 %v133, 0.0
  %v152 = vmax.f32 %v138, 0.0
  %v153 = vmax.f32 %v143, 0.0
  %v154 = vmax.f32 %v148, 0.0
  %v155 = vld [vmem:[%s1] sm:$0x1]
  %v156 = vlaneseq
  %v157 = vshrl.u32 %v156, 7
  %v158 = vlaneseq
  %v159 = vshrl.u32 %v158, 7
  %v160 = vsub.s32 0, %v159
  %v161 = vrot.slane %v155, %v160
  %vm162 = vcmp.eq.s32.totalorder %v157, %v161
  %v163 = vsel %vm162, 1, 0
  %v164 = vcvt.s32.f32 %v163
  %v165 = vld [vmem:[%s4] sm:$0xff]
  %v166 = vld [vmem:[%s4 + $0x8] sm:$0xff]
  %v167 = vld [vmem:[%s4 + $0x10] sm:$0xff]
  %v168 = vld [vmem:[%s4 + $0x18] sm:$0xff]
  %vm169 = vcmask 31744
  %v171 = vsel %vm169, %v165, 0
  %v174 = vsel %vm169, %v166, 0
  %v177 = vsel %vm169, %v167, 0
  %v180 = vsel %vm169, %v168, 0
  %vm182 = vcmask 1043456
  %v184 = vsel %vm182, %v164, 0
  %186 = vmatprep.subr.mxu0 0.0
  %187 = vmatpush1.msra.mxu0 %v184
  %188 = vmatprep.subr.mxu0 0.0
  %189 = vmatpush1.msra.mxu0 0.0
  %190 = vmatprep.subr.mxu0 0.0
  %191 = vmatpush1.msra.mxu0 0.0
  %192 = vmatprep.subr.mxu0 0.0
  %193 = vmatpush1.msra.mxu0 0.0
  %194 = vmatprep.subr.mxu0 0.0
  %195 = vmatpush1.msra.mxu0 0.0
  %196 = vmatprep.subr.mxu0 0.0
  %197 = vmatpush1.msra.mxu0 0.0
  %198 = vmatprep.subr.mxu0 0.0
  %199 = vmatpush1.msra.mxu0 0.0
  %200 = vmatprep.subr.mxu0 0.0
  %201 = vmatpush1.msra.mxu0 0.0
  %202 = vmatprep.subr.mxu0 0.0
  %203 = vmatpush1.msra.mxu0 0.0
  %204 = vmatprep.subr.mxu0 0.0
  %205 = vmatpush1.msra.mxu0 0.0
  %206 = vmatprep.subr.mxu0 0.0
  %207 = vmatpush1.msra.mxu0 0.0
  %208 = vmatprep.subr.mxu0 0.0
  %209 = vmatpush1.msra.mxu0 0.0
  %210 = vmatprep.subr.mxu0 0.0
  %211 = vmatpush1.msra.mxu0 0.0
  %212 = vmatprep.subr.mxu0 0.0
  %213 = vmatpush1.msra.mxu0 0.0
  %214 = vmatprep.subr.mxu0 0.0
  %215 = vmatpush1.msra.mxu0 0.0
  %216 = vmatprep.subr.mxu0 0.0
  %217 = vmatpush1.msra.mxu0 0.0
  %218 = vmatprep.subr.mxu0 0.0
  %219 = vmatpush1.msra.mxu0 0.0
  %220 = vmatprep.subr.mxu0 0.0
  %221 = vmatpush1.msra.mxu0 0.0
  %222 = vmatprep.subr.mxu0 0.0
  %223 = vmatpush1.msra.mxu0 0.0
  %224 = vmatprep.subr.mxu0 0.0
  %225 = vmatpush1.msra.mxu0 0.0
  %226 = vmatprep.subr.mxu0 0.0
  %227 = vmatpush1.msra.mxu0 0.0
  %228 = vmatprep.subr.mxu0 0.0
  %229 = vmatpush1.msra.mxu0 0.0
  %230 = vmatprep.subr.mxu0 0.0
  %231 = vmatpush1.msra.mxu0 0.0
  %232 = vmatprep.subr.mxu0 0.0
  %233 = vmatpush1.msra.mxu0 0.0
  %234 = vmatprep.subr.mxu0 0.0
  %235 = vmatpush1.msra.mxu0 0.0
  %236 = vmatprep.subr.mxu0 0.0
  %237 = vmatpush1.msra.mxu0 0.0
  %238 = vmatprep.subr.mxu0 0.0
  %239 = vmatpush1.msra.mxu0 0.0
  %240 = vmatprep.subr.mxu0 0.0
  %241 = vmatpush1.msra.mxu0 0.0
  %242 = vmatprep.subr.mxu0 0.0
  %243 = vmatpush1.msra.mxu0 0.0
  %244 = vmatprep.subr.mxu0 0.0
  %245 = vmatpush1.msra.mxu0 0.0
  %246 = vmatprep.subr.mxu0 0.0
  %247 = vmatpush1.msra.mxu0 0.0
  %248 = vmatprep.subr.mxu0 0.0
  %249 = vmatpush1.msra.mxu0 0.0
  %250 = vmatprep.mubr.f32.mxu0 0.0
  %251 = vmatmul.mubr.f32.gmra.mrb[0].mxu0 %v171
  %v252 = vpop.f32.mrb[0].mxu0
  %v253 = vadd.f32 0.0, %v252
  %v254 = vpop.f32.mrb[0].mxu0
  %255 = vmatprep.mubr.f32.mxu0 0.0
  %256 = vmatmul.mubr.f32.gmra.mrb[0].mxu0 %v174
  %v257 = vpop.f32.mrb[0].mxu0
  %v258 = vadd.f32 0.0, %v257
  %v259 = vpop.f32.mrb[0].mxu0
  %260 = vmatprep.mubr.f32.mxu0 0.0
  %261 = vmatmul.mubr.f32.gmra.mrb[0].mxu0 %v177
  %v262 = vpop.f32.mrb[0].mxu0
  %v263 = vadd.f32 0.0, %v262
  %v264 = vpop.f32.mrb[0].mxu0
  %265 = vmatprep.mubr.f32.mxu0 0.0
  %266 = vmatmul.mubr.f32.gmra.mrb[0].mxu0 %v180
  %v267 = vpop.f32.mrb[0].mxu0
  %v268 = vadd.f32 0.0, %v267
  %v269 = vpop.f32.mrb[0].mxu0
  %270 = vdwg.mxu0
  %v271 = vld [vmem:[%s5] sm:$0x1]
  %v273 = vsel %vm169, %v271, 0
  %275 = vmatprep.subr.mxu0 0.0
  %276 = vmatpush1.msra.mxu0 %v184
  %277 = vmatprep.subr.mxu0 0.0
  %278 = vmatpush1.msra.mxu0 0.0
  %279 = vmatprep.subr.mxu0 0.0
  %280 = vmatpush1.msra.mxu0 0.0
  %281 = vmatprep.subr.mxu0 0.0
  %282 = vmatpush1.msra.mxu0 0.0
  %283 = vmatprep.subr.mxu0 0.0
  %284 = vmatpush1.msra.mxu0 0.0
  %285 = vmatprep.subr.mxu0 0.0
  %286 = vmatpush1.msra.mxu0 0.0
  %287 = vmatprep.subr.mxu0 0.0
  %288 = vmatpush1.msra.mxu0 0.0
  %289 = vmatprep.subr.mxu0 0.0
  %290 = vmatpush1.msra.mxu0 0.0
  %291 = vmatprep.subr.mxu0 0.0
  %292 = vmatpush1.msra.mxu0 0.0
  %293 = vmatprep.subr.mxu0 0.0
  %294 = vmatpush1.msra.mxu0 0.0
  %295 = vmatprep.subr.mxu0 0.0
  %296 = vmatpush1.msra.mxu0 0.0
  %297 = vmatprep.subr.mxu0 0.0
  %298 = vmatpush1.msra.mxu0 0.0
  %299 = vmatprep.subr.mxu0 0.0
  %300 = vmatpush1.msra.mxu0 0.0
  %301 = vmatprep.subr.mxu0 0.0
  %302 = vmatpush1.msra.mxu0 0.0
  %303 = vmatprep.subr.mxu0 0.0
  %304 = vmatpush1.msra.mxu0 0.0
  %305 = vmatprep.subr.mxu0 0.0
  %306 = vmatpush1.msra.mxu0 0.0
  %307 = vmatprep.subr.mxu0 0.0
  %308 = vmatpush1.msra.mxu0 0.0
  %309 = vmatprep.subr.mxu0 0.0
  %310 = vmatpush1.msra.mxu0 0.0
  %311 = vmatprep.subr.mxu0 0.0
  %312 = vmatpush1.msra.mxu0 0.0
  %313 = vmatprep.subr.mxu0 0.0
  %314 = vmatpush1.msra.mxu0 0.0
  %315 = vmatprep.subr.mxu0 0.0
  %316 = vmatpush1.msra.mxu0 0.0
  %317 = vmatprep.subr.mxu0 0.0
  %318 = vmatpush1.msra.mxu0 0.0
  %319 = vmatprep.subr.mxu0 0.0
  %320 = vmatpush1.msra.mxu0 0.0
  %321 = vmatprep.subr.mxu0 0.0
  %322 = vmatpush1.msra.mxu0 0.0
  %323 = vmatprep.subr.mxu0 0.0
  %324 = vmatpush1.msra.mxu0 0.0
  %325 = vmatprep.subr.mxu0 0.0
  %326 = vmatpush1.msra.mxu0 0.0
  %327 = vmatprep.subr.mxu0 0.0
  %328 = vmatpush1.msra.mxu0 0.0
  %329 = vmatprep.subr.mxu0 0.0
  %330 = vmatpush1.msra.mxu0 0.0
  %331 = vmatprep.subr.mxu0 0.0
  %332 = vmatpush1.msra.mxu0 0.0
  %333 = vmatprep.subr.mxu0 0.0
  %334 = vmatpush1.msra.mxu0 0.0
  %335 = vmatprep.subr.mxu0 0.0
  %336 = vmatpush1.msra.mxu0 0.0
  %337 = vmatprep.subr.mxu0 0.0
  %338 = vmatpush1.msra.mxu0 0.0
  %339 = vmatprep.mubr.f32.mxu0 0.0
  %340 = vmatmul.mubr.f32.gmra.mrb[0].mxu0 %v273
  %v341 = vpop.f32.mrb[0].mxu0
  %v342 = vadd.f32 0.0, %v341
  %v343 = vpop.f32.mrb[0].mxu0
  %344 = vdwg.mxu0
  %v345 = vmul.f32 %v151, %v253
  %v346 = vmul.f32 %v152, %v258
  %v347 = vmul.f32 %v153, %v263
  %v348 = vmul.f32 %v154, %v268
  %v349 = vadd.f32 %v345, %v346
  %v350 = vadd.f32 %v349, %v347
  %v351 = vadd.f32 %v350, %v348
  %v352 = vrot.slane %v351, 4
  %v353 = vadd.f32 %v351, %v352
  %v354 = vrot.slane %v353, 2
  %v355 = vadd.f32 %v353, %v354
  %v356 = vrot.slane %v355, 1
  %v357 = vadd.f32 %v355, %v356
  %v358 = vadd.f32 %v357, %v342
  %359 = vst [vmem:[%s6] sm:$0x1] %v358
  // Predicated region
  $region26: #{value_net_forward.1} parent=0 // pred_check
    _
  $region27: #{value_net_forward.1} parent=0 // pred_check_branch
    %361 = sbr.rel (0) target = $region29
  $region28: #{value_net_forward.1} parent=0 // pred_region
    _
  $region29: #{value_net_forward.1} parent=0 // pred_fallthru
    _
  // Predicated region
  $region30: #{value_net_forward.1} parent=0 // pred_check
    _
  $region31: #{value_net_forward.1} parent=0 // pred_check_branch
    %363 = sbr.rel (0) target = $region33
  $region32: #{value_net_forward.1} parent=0 // pred_region
    _
  $region33: #{value_net_forward.1} parent=0 // pred_fallthru
    _

</llo_original>
